<compile_context>
chip_gen: v6e
topology: v6e:2x2x1
jax: 0.10.0
libtpu: 0.0.40
codegen_flags: <defaults>
</compile_context>

<pallas_src>
import jax
import jax.numpy as jnp
from jax.experimental import pallas as pl
from jax.experimental.pallas import tpu as pltpu


def _mlp3_kernel(x_ref, w1_ref, w23_ref, b_ref, o_ref):
    # Static, 128-aligned views into the packed parameter buffers (free).
    h1 = w1_ref.shape[1]          # 256 * width
    h2 = w23_ref.shape[1]         # 128 * width (also the padded fc3 out dim)
    x = x_ref[...]
    w2 = w23_ref[0:h1, :]                      # (h1, h2)
    w3 = w23_ref[h1:h1 + h2, :]                # (h2, h2)  (fc3 cols zero-padded)
    b1 = b_ref[:, 0:h1]                        # (1, h1)
    b2 = b_ref[:, h1:h1 + h2]                  # (1, h2)
    b3 = b_ref[:, h1 + h2:h1 + 2 * h2]         # (1, h2)

    a1 = jnp.maximum(
        jnp.dot(x, w1_ref[...], preferred_element_type=jnp.float32) + b1, 0.0)
    a2 = jnp.maximum(
        jnp.dot(a1, w2, preferred_element_type=jnp.float32) + b2, 0.0)
    out = jnp.dot(a2, w3, preferred_element_type=jnp.float32) + b3
    o_ref[...] = out.astype(o_ref.dtype)


def prepare_params(params):
    """One-time conversion (call at init, NOT per forward pass).

    PyTorch-style (out,in) weights -> (in,out) kernel layout.  fc3's output
    columns (10) are zero-padded up to h2 (128*width) so its weight stacks
    under fc2's into a single contiguous buffer and the kernel's output store
    is lane-dense.  Biases are concatenated into one (1, h1+2*h2) buffer.
    """
    w1 = jnp.asarray(params["fc1_w"], jnp.float32).T   # (in_feat, h1)
    w2 = jnp.asarray(params["fc2_w"], jnp.float32).T   # (h1, h2)
    w3 = jnp.asarray(params["fc3_w"], jnp.float32).T   # (h2, n_out)
    b1 = jnp.asarray(params["fc1_b"], jnp.float32)
    b2 = jnp.asarray(params["fc2_b"], jnp.float32)
    b3 = jnp.asarray(params["fc3_b"], jnp.float32)

    h1, h2 = w2.shape
    n_out = w3.shape[1]
    pad_n = h2 - n_out                                  # pad 10 -> 128*width
    w3p = jnp.pad(w3, ((0, 0), (0, pad_n)))
    b3p = jnp.pad(b3, (0, pad_n))

    w23 = jnp.concatenate([w2, w3p], axis=0)            # (h1+h2, h2)
    b_packed = jnp.concatenate([b1, b2, b3p])[None, :]  # (1, h1+2*h2)
    return dict(w1=w1, w23=w23, b=b_packed, h1=h1, h2=h2, n_out=n_out)


def mlp_3layer_pallas(x_nchw, prepped, *, grid_threshold=2048, tm=512):
    """Forward pass of mlp_3layer using one fused Pallas TPU kernel.

    x_nchw        : (B, C, H, W) float32 (flattened like torch's .view(B, -1))
    prepped       : output of prepare_params() (packed kernel-layout params)
    grid_threshold: below this batch size everything is VMEM-resident with no
                    grid; at/above it the batch dim is gridded (block tm rows,
                    weights resident, "parallel" M axis -> both v7x TCs help).
    """
    B = x_nchw.shape[0]
    x = x_nchw.reshape(B, -1)
    in_feat = x.shape[1]

    w1, w23, b = prepped["w1"], prepped["w23"], prepped["b"]
    h1, h2, n_out = prepped["h1"], prepped["h2"], prepped["n_out"]

    vmem = pl.BlockSpec(memory_space=pltpu.MemorySpace.VMEM)

    if B < grid_threshold:
        # Small batch: no grid, no batch padding (full-array blocks are exempt
        # from the (8,128) divisibility rule).  Total footprint ~1.2 MiB at
        # width=1 -> single-buffered, fits v5e/v6e/v7x VMEM with huge margin.
        flops = 2 * B * (in_feat * h1 + h1 * h2 + h2 * h2)
        bytes_accessed = 4 * (B * in_feat + w1.size + w23.size + b.size + B * h2)
        out_padded = pl.pallas_call(
            _mlp3_kernel,
            out_shape=jax.ShapeDtypeStruct((B, h2), jnp.float32),
            in_specs=[vmem] * 4,
            out_specs=vmem,
            cost_estimate=pl.CostEstimate(
                flops=flops, transcendentals=0, bytes_accessed=bytes_accessed),
        )(x, w1, w23, b)
        return out_padded[:, :n_out]

    # Large batch: grid over M only; weight/bias blocks map to (0, 0) every
    # step so they stay resident while activation tiles pipeline.
    m_pad = (-B) % tm
    if m_pad:
        x = jnp.pad(x, ((0, m_pad), (0, 0)))
    M = x.shape[0]
    flops = 2 * M * (in_feat * h1 + h1 * h2 + h2 * h2)
    bytes_accessed = 4 * (M * in_feat + w1.size + w23.size + b.size + M * h2)
    out_padded = pl.pallas_call(
        _mlp3_kernel,
        out_shape=jax.ShapeDtypeStruct((M, h2), jnp.float32),
        grid=(M // tm,),
        in_specs=[
            pl.BlockSpec((tm, in_feat), lambda i: (i, 0)),
            pl.BlockSpec((in_feat, h1), lambda i: (0, 0)),
            pl.BlockSpec((h1 + h2, h2), lambda i: (0, 0)),
            pl.BlockSpec((1, h1 + 2 * h2), lambda i: (0, 0)),
        ],
        out_specs=pl.BlockSpec((tm, h2), lambda i: (i, 0)),
        compiler_params=pltpu.CompilerParams(dimension_semantics=("parallel",)),
        cost_estimate=pl.CostEstimate(
            flops=flops, transcendentals=0, bytes_accessed=bytes_accessed),
    )(x, w1, w23, b)
    return out_padded[:B, :n_out]


def init_params(key, in_ch, in_dim, width=1):
    """Deterministic, PyTorch-shaped parameter init (uniform like nn.Linear)."""
    in_feat = in_ch * in_dim * in_dim
    dims = [(256 * width, in_feat), (128 * width, 256 * width), (10, 128 * width)]
    params = {}
    for i, (out_f, in_f) in enumerate(dims, start=1):
        key, kw, kb = jax.random.split(key, 3)
        bound = 1.0 / jnp.sqrt(in_f)
        params[f"fc{i}_w"] = jax.random.uniform(
            kw, (out_f, in_f), jnp.float32, -bound, bound)
        params[f"fc{i}_b"] = jax.random.uniform(
            kb, (out_f,), jnp.float32, -bound, bound)
    return params


def mlp_3layer_ref(x_nchw, params):
    """Pure-JAX reference (mirrors the PyTorch module) for correctness check."""
    x = x_nchw.reshape(x_nchw.shape[0], -1)
    hp = jax.lax.Precision.HIGHEST
    h = jnp.maximum(jnp.dot(x, params["fc1_w"].T, precision=hp) + params["fc1_b"], 0.0)
    h = jnp.maximum(jnp.dot(h, params["fc2_w"].T, precision=hp) + params["fc2_b"], 0.0)
    return jnp.dot(h, params["fc3_w"].T, precision=hp) + params["fc3_b"]


if __name__ == "__main__":
    B, C, H = 2, 4, 16  # batch=2, in_ch=4, in_dim=16, width=1
    key = jax.random.PRNGKey(0)
    key, kx = jax.random.split(key)
    x = jax.random.normal(kx, (B, C, H, H), jnp.float32)
    params = init_params(key, in_ch=C, in_dim=H, width=1)

    # One-time param preparation (out of the per-call path).
    prepped = prepare_params(params)

    # Small-batch (no-grid, all-resident) path.
    out = jax.block_until_ready(mlp_3layer_pallas(x, prepped))
    ref = mlp_3layer_ref(x, params)
    assert out.shape == (B, 10)
    assert jnp.allclose(out, ref, atol=1e-4, rtol=1e-4), "mismatch vs reference"

    # Exercise the large-batch gridded path once (forced threshold).
    key, kx2 = jax.random.split(key)
    xb = jax.random.normal(kx2, (16, C, H, H), jnp.float32)
    outb = jax.block_until_ready(
        mlp_3layer_pallas(xb, prepped, grid_threshold=1, tm=8))
    refb = mlp_3layer_ref(xb, params)
    assert outb.shape == (16, 10)
    assert jnp.allclose(outb, refb, atol=1e-4, rtol=1e-4), "mismatch (grid path)"

    print("KERNEL_OK")
</pallas_src>

<mosaic_0001>
module attributes {stable_mosaic.version = 11 : i64} {
  func.func @_mlp3_kernel(%arg0: memref<2x1024xf32, #tpu.memory_space<vmem>>, %arg1: memref<1024x256xf32, #tpu.memory_space<vmem>>, %arg2: memref<384x128xf32, #tpu.memory_space<vmem>>, %arg3: memref<1x512xf32, #tpu.memory_space<vmem>>, %arg4: memref<2x128xf32, #tpu.memory_space<vmem>>) attributes {dimension_semantics = [], scalar_prefetch = 0 : i64, scratch_operands = 0 : i64, tpu.core_type = #tpu.core_type<tc>} {
    %c0 = arith.constant 0 : index
    %c0_0 = arith.constant 0 : index
    %0 = vector.load %arg0[%c0, %c0_0] : memref<2x1024xf32, #tpu.memory_space<vmem>>, vector<2x1024xf32>
    %c0_1 = arith.constant 0 : index
    %c0_2 = arith.constant 0 : index
    %1 = vector.load %arg2[%c0_1, %c0_2] : memref<384x128xf32, #tpu.memory_space<vmem>>, vector<256x128xf32>
    %c256 = arith.constant 256 : index
    %c0_3 = arith.constant 0 : index
    %2 = vector.load %arg2[%c256, %c0_3] : memref<384x128xf32, #tpu.memory_space<vmem>>, vector<128x128xf32>
    %c0_4 = arith.constant 0 : index
    %c0_5 = arith.constant 0 : index
    %3 = vector.load %arg3[%c0_4, %c0_5] : memref<1x512xf32, #tpu.memory_space<vmem>>, vector<1x256xf32>
    %c0_6 = arith.constant 0 : index
    %c256_7 = arith.constant 256 : index
    %4 = vector.load %arg3[%c0_6, %c256_7] : memref<1x512xf32, #tpu.memory_space<vmem>>, vector<1x128xf32>
    %c0_8 = arith.constant 0 : index
    %c384 = arith.constant 384 : index
    %5 = vector.load %arg3[%c0_8, %c384] : memref<1x512xf32, #tpu.memory_space<vmem>>, vector<1x128xf32>
    %c0_9 = arith.constant 0 : index
    %c0_10 = arith.constant 0 : index
    %6 = vector.load %arg1[%c0_9, %c0_10] : memref<1024x256xf32, #tpu.memory_space<vmem>>, vector<1024x256xf32>
    %cst = arith.constant dense<0.000000e+00> : vector<2x256xf32>
    %7 = tpu.matmul %0, %6, %cst {dimension_numbers = #tpu.dot_dimension_numbers<[1], [0], [0], [1], [0, 0, 1, 1], [], []>} : vector<2x1024xf32>, vector<1024x256xf32>, vector<2x256xf32> -> vector<2x256xf32>
    %8 = vector.broadcast %3 : vector<1x256xf32> to vector<2x256xf32>
    %9 = arith.addf %7, %8 : vector<2x256xf32>
    %cst_11 = arith.constant 0.000000e+00 : f32
    %10 = vector.broadcast %cst_11 : f32 to vector<2x256xf32>
    %11 = arith.maximumf %9, %10 : vector<2x256xf32>
    %cst_12 = arith.constant dense<0.000000e+00> : vector<2x128xf32>
    %12 = tpu.matmul %11, %1, %cst_12 {dimension_numbers = #tpu.dot_dimension_numbers<[1], [0], [0], [1], [0, 0, 1, 1], [], []>} : vector<2x256xf32>, vector<256x128xf32>, vector<2x128xf32> -> vector<2x128xf32>
    %13 = vector.broadcast %4 : vector<1x128xf32> to vector<2x128xf32>
    %14 = arith.addf %12, %13 : vector<2x128xf32>
    %cst_13 = arith.constant 0.000000e+00 : f32
    %15 = vector.broadcast %cst_13 : f32 to vector<2x128xf32>
    %16 = arith.maximumf %14, %15 : vector<2x128xf32>
    %cst_14 = arith.constant dense<0.000000e+00> : vector<2x128xf32>
    %17 = tpu.matmul %16, %2, %cst_14 {dimension_numbers = #tpu.dot_dimension_numbers<[1], [0], [0], [1], [0, 0, 1, 1], [], []>} : vector<2x128xf32>, vector<128x128xf32>, vector<2x128xf32> -> vector<2x128xf32>
    %18 = vector.broadcast %5 : vector<1x128xf32> to vector<2x128xf32>
    %19 = arith.addf %17, %18 : vector<2x128xf32>
    %c0_15 = arith.constant 0 : index
    %c0_16 = arith.constant 0 : index
    %20 = vector.load %arg4[%c0_15, %c0_16] : memref<2x128xf32, #tpu.memory_space<vmem>>, vector<2x128xf32>
    tpu.vector_store %arg4[%c0_15, %c0_16], %19 {strides = array<i32>} : memref<2x128xf32, #tpu.memory_space<vmem>>, vector<2x128xf32>,
    return
  }
}

</mosaic_0001>

<llo_original>
// kernel: tpu_custom_call.1
$region0: #{tpu_custom_call.1}
  #allocation0 [shape = 'u32[]', space=smem, size = 0x4, offset = 0x4, fixed_abs, tag = 'smem constant byte address 0x4 - core index']
  #allocation1 [shape = 'u32[144,128]{1,0:T(1,128)}', space=vmem, size = 0x12000, scoped, tag = 'internal scratch']
  %s0 = inlined_call_operand.hbm [shape: f32[2,1024], index: 0, kind: input, shape index: {}]
  %s1 = inlined_call_operand.hbm [shape: f32[1024,256], index: 1, kind: input, shape index: {}]
  %s2 = inlined_call_operand.hbm [shape: f32[384,128], index: 2, kind: input, shape index: {}]
  %s3 = inlined_call_operand.vmem [shape: f32[1,512], index: 3, kind: input, shape index: {}]
  %s4 = inlined_call_operand.hbm [shape: f32[2,128], index: 4, kind: output, shape index: {}]
  %s5 = sld [smem:[#allocation0]]
  $region38: #{tpu_custom_call.1} parent=0
    _
  %s7 = ssub.s32 1, %s5
  %s8 = scalar_select 0, %s7, %s5
  $region1: #{tpu_custom_call.1} parent=0
    #allocation2 [shape = 'u8[8192]{0}', space=vmem, size = 0x2000, scoped, tag = 'input window, operand 0, single buffered']
    #allocation3 [shape = 's32[1]{0}', space=sflag, size = 0x4, scoped, tag = 'scoped memory for tpu_custom_call.1']
    #allocation4 [shape = 's32[1]{0}', space=sflag, size = 0x4, scoped, tag = 'scoped memory for tpu_custom_call.1']
    #allocation5 [shape = 'u8[1048576]{0}', space=vmem, size = 0x100000, scoped, tag = 'input window, operand 1, single buffered']
    #allocation6 [shape = 's32[1]{0}', space=sflag, size = 0x4, scoped, tag = 'scoped memory for tpu_custom_call.1']
    #allocation7 [shape = 'u8[196608]{0}', space=vmem, size = 0x30000, scoped, tag = 'input window, operand 2, single buffered']
    #allocation8 [shape = 'u8[1024]{0}', space=vmem, size = 0x400, scoped, tag = 'output window, operand 0, single buffered']
    %9 = vsyncpa [#allocation3], 0
    %10 = vsyncpa [#allocation6], 0
    %11 = vsyncpa [#allocation4], 0
    // Predicated region
    $region2: #{tpu_custom_call.1} parent=1 // pred_check
      _
    $region3: #{tpu_custom_call.1} parent=1 // pred_check_branch
      %13 = sbr.rel (0) target = $region5
    $region4: #{tpu_custom_call.1} parent=1 // pred_region
      %s15 = ssub.s32 256, 256
      %16 = vsyncadd [#allocation3], %s15
      %s18 = sshll.u32 [#allocation2], 4
      %s19 = int_to_ptr.vmem [resolvable:$true] %s18
      %21 = dma.hbm_to_vmem [thread:$0]  %s0, 256, %s19, [#allocation3]
    $region5: #{tpu_custom_call.1} parent=1 // pred_fallthru
      _
    // Predicated region
    $region6: #{tpu_custom_call.1} parent=1 // pred_check
      _
    $region7: #{tpu_custom_call.1} parent=1 // pred_check_branch
      %23 = sbr.rel (0) target = $region9
    $region8: #{tpu_custom_call.1} parent=1 // pred_region
      %s25 = ssub.s32 32768, 32768
      %26 = vsyncadd [#allocation6], %s25
      %s27 = sshll.u32 [#allocation5], 4
      %s28 = int_to_ptr.vmem [resolvable:$true] %s27
      %33 = dma.hbm_to_vmem [thread:$0]  %s1, 32768, %s28, [#allocation6], 256, 256, 16
    $region9: #{tpu_custom_call.1} parent=1 // pred_fallthru
      _
    // Predicated region
    $region10: #{tpu_custom_call.1} parent=1 // pred_check
      _
    $region11: #{tpu_custom_call.1} parent=1 // pred_check_branch
      %35 = sbr.rel (0) target = $region13
    $region12: #{tpu_custom_call.1} parent=1 // pred_region
      %s37 = ssub.s32 6144, 6144
      %38 = vsyncadd [#allocation6], %s37
      %s39 = sshll.u32 [#allocation7], 4
      %s40 = int_to_ptr.vmem [resolvable:$true] %s39
      %45 = dma.hbm_to_vmem [thread:$0]  %s2, 6144, %s40, [#allocation6], 128, 128, 8
    $region13: #{tpu_custom_call.1} parent=1 // pred_fallthru
      _
    // Predicated region
    $region14: #{tpu_custom_call.1} parent=1 // pred_check
      _
    $region15: #{tpu_custom_call.1} parent=1 // pred_check_branch
      %47 = sbr.rel (0) target = $region17
    $region16: #{tpu_custom_call.1} parent=1 // pred_region
      _
    $region17: #{tpu_custom_call.1} parent=1 // pred_fallthru
      _
    // Predicated region
    $region18: #{tpu_custom_call.1} parent=1 // pred_check
      _
    $region19: #{tpu_custom_call.1} parent=1 // pred_check_branch
      %49 = sbr.rel (0) target = $region21
    $region20: #{tpu_custom_call.1} parent=1 // pred_region
      %50 = dma.done [#allocation3], 256
    $region21: #{tpu_custom_call.1} parent=1 // pred_fallthru
      _
    // Predicated region
    $region22: #{tpu_custom_call.1} parent=1 // pred_check
      _
    $region23: #{tpu_custom_call.1} parent=1 // pred_check_branch
      %52 = sbr.rel (0) target = $region25
    $region24: #{tpu_custom_call.1} parent=1 // pred_region
      %53 = dma.done [#allocation6], 32768
    $region25: #{tpu_custom_call.1} parent=1 // pred_fallthru
      _
    // Predicated region
    $region26: #{tpu_custom_call.1} parent=1 // pred_check
      _
    $region27: #{tpu_custom_call.1} parent=1 // pred_check_branch
      %55 = sbr.rel (0) target = $region29
    $region28: #{tpu_custom_call.1} parent=1 // pred_region
      %56 = dma.done [#allocation6], 6144
    $region29: #{tpu_custom_call.1} parent=1 // pred_fallthru
      _
    %v57 = vld [vmem:[#allocation2] sm:$0xff]
    %v58 = vld [vmem:[#allocation2 + $0x8] sm:$0xff]
    %v59 = vld [vmem:[#allocation7] sm:$0xff]
    %v60 = vld [vmem:[#allocation7 + $0x8] sm:$0xff]
    %v61 = vld [vmem:[#allocation7 + $0x10] sm:$0xff]
    %v62 = vld [vmem:[#allocation7 + $0x18] sm:$0xff]
    %v63 = vld [vmem:[#allocation7 + $0x20] sm:$0xff]
    %v64 = vld [vmem:[#allocation7 + $0x28] sm:$0xff]
    %v65 = vld [vmem:[#allocation7 + $0x30] sm:$0xff]
    %v66 = vld [vmem:[#allocation7 + $0x38] sm:$0xff]
    %v67 = vld [vmem:[#allocation7 + $0x40] sm:$0xff]
    %v68 = vld [vmem:[#allocation7 + $0x48] sm:$0xff]
    %v69 = vld [vmem:[#allocation7 + $0x50] sm:$0xff]
    %v70 = vld [vmem:[#allocation7 + $0x58] sm:$0xff]
    %v71 = vld [vmem:[#allocation7 + $0x60] sm:$0xff]
    %v72 = vld [vmem:[#allocation7 + $0x68] sm:$0xff]
    %v73 = vld [vmem:[#allocation7 + $0x70] sm:$0xff]
    %v74 = vld [vmem:[#allocation7 + $0x78] sm:$0xff]
    %v75 = vld [vmem:[#allocation7 + $0x80] sm:$0xff]
    %v76 = vld [vmem:[#allocation7 + $0x88] sm:$0xff]
    %v77 = vld [vmem:[#allocation7 + $0x90] sm:$0xff]
    %v78 = vld [vmem:[#allocation7 + $0x98] sm:$0xff]
    %v79 = vld [vmem:[#allocation7 + $0xa0] sm:$0xff]
    %v80 = vld [vmem:[#allocation7 + $0xa8] sm:$0xff]
    %v81 = vld [vmem:[#allocation7 + $0xb0] sm:$0xff]
    %v82 = vld [vmem:[#allocation7 + $0xb8] sm:$0xff]
    %v83 = vld [vmem:[#allocation7 + $0xc0] sm:$0xff]
    %v84 = vld [vmem:[#allocation7 + $0xc8] sm:$0xff]
    %v85 = vld [vmem:[#allocation7 + $0xd0] sm:$0xff]
    %v86 = vld [vmem:[#allocation7 + $0xd8] sm:$0xff]
    %v87 = vld [vmem:[#allocation7 + $0xe0] sm:$0xff]
    %v88 = vld [vmem:[#allocation7 + $0xe8] sm:$0xff]
    %v89 = vld [vmem:[#allocation7 + $0xf0] sm:$0xff]
    %v90 = vld [vmem:[#allocation7 + $0xf8] sm:$0xff]
    %v91 = vld [vmem:[#allocation7 + $0x100] sm:$0xff]
    %v92 = vld [vmem:[#allocation7 + $0x108] sm:$0xff]
    %v93 = vld [vmem:[#allocation7 + $0x110] sm:$0xff]
    %v94 = vld [vmem:[#allocation7 + $0x118] sm:$0xff]
    %v95 = vld [vmem:[#allocation7 + $0x120] sm:$0xff]
    %v96 = vld [vmem:[#allocation7 + $0x128] sm:$0xff]
    %v97 = vld [vmem:[#allocation7 + $0x130] sm:$0xff]
    %v98 = vld [vmem:[#allocation7 + $0x138] sm:$0xff]
    %v99 = vld [vmem:[#allocation7 + $0x140] sm:$0xff]
    %v100 = vld [vmem:[#allocation7 + $0x148] sm:$0xff]
    %v101 = vld [vmem:[#allocation7 + $0x150] sm:$0xff]
    %v102 = vld [vmem:[#allocation7 + $0x158] sm:$0xff]
    %v103 = vld [vmem:[#allocation7 + $0x160] sm:$0xff]
    %v104 = vld [vmem:[#allocation7 + $0x168] sm:$0xff]
    %v105 = vld [vmem:[#allocation7 + $0x170] sm:$0xff]
    %v106 = vld [vmem:[#allocation7 + $0x178] sm:$0xff]
    %v107 = vld [vmem:[%s3] sm:$0x3]
    %v108 = vld [vmem:[%s3 + $0x2] sm:$0x1]
    %v109 = vld [vmem:[%s3 + $0x3] sm:$0x1]
    %v110 = vld [vmem:[#allocation5] sm:$0xff]
    %v111 = vld [vmem:[#allocation5 + $0x8] sm:$0xff]
    %v112 = vld [vmem:[#allocation5 + $0x10] sm:$0xff]
    %v113 = vld [vmem:[#allocation5 + $0x18] sm:$0xff]
    %v114 = vld [vmem:[#allocation5 + $0x20] sm:$0xff]
    %v115 = vld [vmem:[#allocation5 + $0x28] sm:$0xff]
    %v116 = vld [vmem:[#allocation5 + $0x30] sm:$0xff]
    %v117 = vld [vmem:[#allocation5 + $0x38] sm:$0xff]
    %v118 = vld [vmem:[#allocation5 + $0x40] sm:$0xff]
    %v119 = vld [vmem:[#allocation5 + $0x48] sm:$0xff]
    %v120 = vld [vmem:[#allocation5 + $0x50] sm:$0xff]
    %v121 = vld [vmem:[#allocation5 + $0x58] sm:$0xff]
    %v122 = vld [vmem:[#allocation5 + $0x60] sm:$0xff]
    %v123 = vld [vmem:[#allocation5 + $0x68] sm:$0xff]
    %v124 = vld [vmem:[#allocation5 + $0x70] sm:$0xff]
    %v125 = vld [vmem:[#allocation5 + $0x78] sm:$0xff]
    %v126 = vld [vmem:[#allocation5 + $0x80] sm:$0xff]
    %v127 = vld [vmem:[#allocation5 + $0x88] sm:$0xff]
    %v128 = vld [vmem:[#allocation5 + $0x90] sm:$0xff]
    %v129 = vld [vmem:[#allocation5 + $0x98] sm:$0xff]
    %v130 = vld [vmem:[#allocation5 + $0xa0] sm:$0xff]
    %v131 = vld [vmem:[#allocation5 + $0xa8] sm:$0xff]
    %v132 = vld [vmem:[#allocation5 + $0xb0] sm:$0xff]
    %v133 = vld [vmem:[#allocation5 + $0xb8] sm:$0xff]
    %v134 = vld [vmem:[#allocation5 + $0xc0] sm:$0xff]
    %v135 = vld [vmem:[#allocation5 + $0xc8] sm:$0xff]
    %v136 = vld [vmem:[#allocation5 + $0xd0] sm:$0xff]
    %v137 = vld [vmem:[#allocation5 + $0xd8] sm:$0xff]
    %v138 = vld [vmem:[#allocation5 + $0xe0] sm:$0xff]
    %v139 = vld [vmem:[#allocation5 + $0xe8] sm:$0xff]
    %v140 = vld [vmem:[#allocation5 + $0xf0] sm:$0xff]
    %v141 = vld [vmem:[#allocation5 + $0xf8] sm:$0xff]
    %v142 = vld [vmem:[#allocation5 + $0x100] sm:$0xff]
    %v143 = vld [vmem:[#allocation5 + $0x108] sm:$0xff]
    %v144 = vld [vmem:[#allocation5 + $0x110] sm:$0xff]
    %v145 = vld [vmem:[#allocation5 + $0x118] sm:$0xff]
    %v146 = vld [vmem:[#allocation5 + $0x120] sm:$0xff]
    %v147 = vld [vmem:[#allocation5 + $0x128] sm:$0xff]
    %v148 = vld [vmem:[#allocation5 + $0x130] sm:$0xff]
    %v149 = vld [vmem:[#allocation5 + $0x138] sm:$0xff]
    %v150 = vld [vmem:[#allocation5 + $0x140] sm:$0xff]
    %v151 = vld [vmem:[#allocation5 + $0x148] sm:$0xff]
    %v152 = vld [vmem:[#allocation5 + $0x150] sm:$0xff]
    %v153 = vld [vmem:[#allocation5 + $0x158] sm:$0xff]
    %v154 = vld [vmem:[#allocation5 + $0x160] sm:$0xff]
    %v155 = vld [vmem:[#allocation5 + $0x168] sm:$0xff]
    %v156 = vld [vmem:[#allocation5 + $0x170] sm:$0xff]
    %v157 = vld [vmem:[#allocation5 + $0x178] sm:$0xff]
    %v158 = vld [vmem:[#allocation5 + $0x180] sm:$0xff]
    %v159 = vld [vmem:[#allocation5 + $0x188] sm:$0xff]
    %v160 = vld [vmem:[#allocation5 + $0x190] sm:$0xff]
    %v161 = vld [vmem:[#allocation5 + $0x198] sm:$0xff]
    %v162 = vld [vmem:[#allocation5 + $0x1a0] sm:$0xff]
    %v163 = vld [vmem:[#allocation5 + $0x1a8] sm:$0xff]
    %v164 = vld [vmem:[#allocation5 + $0x1b0] sm:$0xff]
    %v165 = vld [vmem:[#allocation5 + $0x1b8] sm:$0xff]
    %v166 = vld [vmem:[#allocation5 + $0x1c0] sm:$0xff]
    %v167 = vld [vmem:[#allocation5 + $0x1c8] sm:$0xff]
    %v168 = vld [vmem:[#allocation5 + $0x1d0] sm:$0xff]
    %v169 = vld [vmem:[#allocation5 + $0x1d8] sm:$0xff]
    %v170 = vld [vmem:[#allocation5 + $0x1e0] sm:$0xff]
    %v171 = vld [vmem:[#allocation5 + $0x1e8] sm:$0xff]
    %v172 = vld [vmem:[#allocation5 + $0x1f0] sm:$0xff]
    %v173 = vld [vmem:[#allocation5 + $0x1f8] sm:$0xff]
    %v174 = vld [vmem:[#allocation5 + $0x200] sm:$0xff]
    %v175 = vld [vmem:[#allocation5 + $0x208] sm:$0xff]
    %v176 = vld [vmem:[#allocation5 + $0x210] sm:$0xff]
    %v177 = vld [vmem:[#allocation5 + $0x218] sm:$0xff]
    %v178 = vld [vmem:[#allocation5 + $0x220] sm:$0xff]
    %v179 = vld [vmem:[#allocation5 + $0x228] sm:$0xff]
    %v180 = vld [vmem:[#allocation5 + $0x230] sm:$0xff]
    %v181 = vld [vmem:[#allocation5 + $0x238] sm:$0xff]
    %v182 = vld [vmem:[#allocation5 + $0x240] sm:$0xff]
    %v183 = vld [vmem:[#allocation5 + $0x248] sm:$0xff]
    %v184 = vld [vmem:[#allocation5 + $0x250] sm:$0xff]
    %v185 = vld [vmem:[#allocation5 + $0x258] sm:$0xff]
    %v186 = vld [vmem:[#allocation5 + $0x260] sm:$0xff]
    %v187 = vld [vmem:[#allocation5 + $0x268] sm:$0xff]
    %v188 = vld [vmem:[#allocation5 + $0x270] sm:$0xff]
    %v189 = vld [vmem:[#allocation5 + $0x278] sm:$0xff]
    %v190 = vld [vmem:[#allocation5 + $0x280] sm:$0xff]
    %v191 = vld [vmem:[#allocation5 + $0x288] sm:$0xff]
    %v192 = vld [vmem:[#allocation5 + $0x290] sm:$0xff]
    %v193 = vld [vmem:[#allocation5 + $0x298] sm:$0xff]
    %v194 = vld [vmem:[#allocation5 + $0x2a0] sm:$0xff]
    %v195 = vld [vmem:[#allocation5 + $0x2a8] sm:$0xff]
    %v196 = vld [vmem:[#allocation5 + $0x2b0] sm:$0xff]
    %v197 = vld [vmem:[#allocation5 + $0x2b8] sm:$0xff]
    %v198 = vld [vmem:[#allocation5 + $0x2c0] sm:$0xff]
    %v199 = vld [vmem:[#allocation5 + $0x2c8] sm:$0xff]
    %v200 = vld [vmem:[#allocation5 + $0x2d0] sm:$0xff]
    %v201 = vld [vmem:[#allocation5 + $0x2d8] sm:$0xff]
    %v202 = vld [vmem:[#allocation5 + $0x2e0] sm:$0xff]
    %v203 = vld [vmem:[#allocation5 + $0x2e8] sm:$0xff]
    %v204 = vld [vmem:[#allocation5 + $0x2f0] sm:$0xff]
    %v205 = vld [vmem:[#allocation5 + $0x2f8] sm:$0xff]
    %v206 = vld [vmem:[#allocation5 + $0x300] sm:$0xff]
    %v207 = vld [vmem:[#allocation5 + $0x308] sm:$0xff]
    %v208 = vld [vmem:[#allocation5 + $0x310] sm:$0xff]
    %v209 = vld [vmem:[#allocation5 + $0x318] sm:$0xff]
    %v210 = vld [vmem:[#allocation5 + $0x320] sm:$0xff]
    %v211 = vld [vmem:[#allocation5 + $0x328] sm:$0xff]
    %v212 = vld [vmem:[#allocation5 + $0x330] sm:$0xff]
    %v213 = vld [vmem:[#allocation5 + $0x338] sm:$0xff]
    %v214 = vld [vmem:[#allocation5 + $0x340] sm:$0xff]
    %v215 = vld [vmem:[#allocation5 + $0x348] sm:$0xff]
    %v216 = vld [vmem:[#allocation5 + $0x350] sm:$0xff]
    %v217 = vld [vmem:[#allocation5 + $0x358] sm:$0xff]
    %v218 = vld [vmem:[#allocation5 + $0x360] sm:$0xff]
    %v219 = vld [vmem:[#allocation5 + $0x368] sm:$0xff]
    %v220 = vld [vmem:[#allocation5 + $0x370] sm:$0xff]
    %v221 = vld [vmem:[#allocation5 + $0x378] sm:$0xff]
    %v222 = vld [vmem:[#allocation5 + $0x380] sm:$0xff]
    %v223 = vld [vmem:[#allocation5 + $0x388] sm:$0xff]
    %v224 = vld [vmem:[#allocation5 + $0x390] sm:$0xff]
    %v225 = vld [vmem:[#allocation5 + $0x398] sm:$0xff]
    %v226 = vld [vmem:[#allocation5 + $0x3a0] sm:$0xff]
    %v227 = vld [vmem:[#allocation5 + $0x3a8] sm:$0xff]
    %v228 = vld [vmem:[#allocation5 + $0x3b0] sm:$0xff]
    %v229 = vld [vmem:[#allocation5 + $0x3b8] sm:$0xff]
    %v230 = vld [vmem:[#allocation5 + $0x3c0] sm:$0xff]
    %v231 = vld [vmem:[#allocation5 + $0x3c8] sm:$0xff]
    %v232 = vld [vmem:[#allocation5 + $0x3d0] sm:$0xff]
    %v233 = vld [vmem:[#allocation5 + $0x3d8] sm:$0xff]
    %v234 = vld [vmem:[#allocation5 + $0x3e0] sm:$0xff]
    %v235 = vld [vmem:[#allocation5 + $0x3e8] sm:$0xff]
    %v236 = vld [vmem:[#allocation5 + $0x3f0] sm:$0xff]
    %v237 = vld [vmem:[#allocation5 + $0x3f8] sm:$0xff]
    %v238 = vld [vmem:[#allocation5 + $0x400] sm:$0xff]
    %v239 = vld [vmem:[#allocation5 + $0x408] sm:$0xff]
    %v240 = vld [vmem:[#allocation5 + $0x410] sm:$0xff]
    %v241 = vld [vmem:[#allocation5 + $0x418] sm:$0xff]
    %v242 = vld [vmem:[#allocation5 + $0x420] sm:$0xff]
    %v243 = vld [vmem:[#allocation5 + $0x428] sm:$0xff]
    %v244 = vld [vmem:[#allocation5 + $0x430] sm:$0xff]
    %v245 = vld [vmem:[#allocation5 + $0x438] sm:$0xff]
    %v246 = vld [vmem:[#allocation5 + $0x440] sm:$0xff]
    %v247 = vld [vmem:[#allocation5 + $0x448] sm:$0xff]
    %v248 = vld [vmem:[#allocation5 + $0x450] sm:$0xff]
    %v249 = vld [vmem:[#allocation5 + $0x458] sm:$0xff]
    %v250 = vld [vmem:[#allocation5 + $0x460] sm:$0xff]
    %v251 = vld [vmem:[#allocation5 + $0x468] sm:$0xff]
    %v252 = vld [vmem:[#allocation5 + $0x470] sm:$0xff]
    %v253 = vld [vmem:[#allocation5 + $0x478] sm:$0xff]
    %v254 = vld [vmem:[#allocation5 + $0x480] sm:$0xff]
    %v255 = vld [vmem:[#allocation5 + $0x488] sm:$0xff]
    %v256 = vld [vmem:[#allocation5 + $0x490] sm:$0xff]
    %v257 = vld [vmem:[#allocation5 + $0x498] sm:$0xff]
    %v258 = vld [vmem:[#allocation5 + $0x4a0] sm:$0xff]
    %v259 = vld [vmem:[#allocation5 + $0x4a8] sm:$0xff]
    %v260 = vld [vmem:[#allocation5 + $0x4b0] sm:$0xff]
    %v261 = vld [vmem:[#allocation5 + $0x4b8] sm:$0xff]
    %v262 = vld [vmem:[#allocation5 + $0x4c0] sm:$0xff]
    %v263 = vld [vmem:[#allocation5 + $0x4c8] sm:$0xff]
    %v264 = vld [vmem:[#allocation5 + $0x4d0] sm:$0xff]
    %v265 = vld [vmem:[#allocation5 + $0x4d8] sm:$0xff]
    %v266 = vld [vmem:[#allocation5 + $0x4e0] sm:$0xff]
    %v267 = vld [vmem:[#allocation5 + $0x4e8] sm:$0xff]
    %v268 = vld [vmem:[#allocation5 + $0x4f0] sm:$0xff]
    %v269 = vld [vmem:[#allocation5 + $0x4f8] sm:$0xff]
    %v270 = vld [vmem:[#allocation5 + $0x500] sm:$0xff]
    %v271 = vld [vmem:[#allocation5 + $0x508] sm:$0xff]
    %v272 = vld [vmem:[#allocation5 + $0x510] sm:$0xff]
    %v273 = vld [vmem:[#allocation5 + $0x518] sm:$0xff]
    %v274 = vld [vmem:[#allocation5 + $0x520] sm:$0xff]
    %v275 = vld [vmem:[#allocation5 + $0x528] sm:$0xff]
    %v276 = vld [vmem:[#allocation5 + $0x530] sm:$0xff]
    %v277 = vld [vmem:[#allocation5 + $0x538] sm:$0xff]
    %v278 = vld [vmem:[#allocation5 + $0x540] sm:$0xff]
    %v279 = vld [vmem:[#allocation5 + $0x548] sm:$0xff]
    %v280 = vld [vmem:[#allocation5 + $0x550] sm:$0xff]
    %v281 = vld [vmem:[#allocation5 + $0x558] sm:$0xff]
    %v282 = vld [vmem:[#allocation5 + $0x560] sm:$0xff]
    %v283 = vld [vmem:[#allocation5 + $0x568] sm:$0xff]
    %v284 = vld [vmem:[#allocation5 + $0x570] sm:$0xff]
    %v285 = vld [vmem:[#allocation5 + $0x578] sm:$0xff]
    %v286 = vld [vmem:[#allocation5 + $0x580] sm:$0xff]
    %v287 = vld [vmem:[#allocation5 + $0x588] sm:$0xff]
    %v288 = vld [vmem:[#allocation5 + $0x590] sm:$0xff]
    %v289 = vld [vmem:[#allocation5 + $0x598] sm:$0xff]
    %v290 = vld [vmem:[#allocation5 + $0x5a0] sm:$0xff]
    %v291 = vld [vmem:[#allocation5 + $0x5a8] sm:$0xff]
    %v292 = vld [vmem:[#allocation5 + $0x5b0] sm:$0xff]
    %v293 = vld [vmem:[#allocation5 + $0x5b8] sm:$0xff]
    %v294 = vld [vmem:[#allocation5 + $0x5c0] sm:$0xff]
    %v295 = vld [vmem:[#allocation5 + $0x5c8] sm:$0xff]
    %v296 = vld [vmem:[#allocation5 + $0x5d0] sm:$0xff]
    %v297 = vld [vmem:[#allocation5 + $0x5d8] sm:$0xff]
    %v298 = vld [vmem:[#allocation5 + $0x5e0] sm:$0xff]
    %v299 = vld [vmem:[#allocation5 + $0x5e8] sm:$0xff]
    %v300 = vld [vmem:[#allocation5 + $0x5f0] sm:$0xff]
    %v301 = vld [vmem:[#allocation5 + $0x5f8] sm:$0xff]
    %v302 = vld [vmem:[#allocation5 + $0x600] sm:$0xff]
    %v303 = vld [vmem:[#allocation5 + $0x608] sm:$0xff]
    %v304 = vld [vmem:[#allocation5 + $0x610] sm:$0xff]
    %v305 = vld [vmem:[#allocation5 + $0x618] sm:$0xff]
    %v306 = vld [vmem:[#allocation5 + $0x620] sm:$0xff]
    %v307 = vld [vmem:[#allocation5 + $0x628] sm:$0xff]
    %v308 = vld [vmem:[#allocation5 + $0x630] sm:$0xff]
    %v309 = vld [vmem:[#allocation5 + $0x638] sm:$0xff]
    %v310 = vld [vmem:[#allocation5 + $0x640] sm:$0xff]
    %v311 = vld [vmem:[#allocation5 + $0x648] sm:$0xff]
    %v312 = vld [vmem:[#allocation5 + $0x650] sm:$0xff]
    %v313 = vld [vmem:[#allocation5 + $0x658] sm:$0xff]
    %v314 = vld [vmem:[#allocation5 + $0x660] sm:$0xff]
    %v315 = vld [vmem:[#allocation5 + $0x668] sm:$0xff]
    %v316 = vld [vmem:[#allocation5 + $0x670] sm:$0xff]
    %v317 = vld [vmem:[#allocation5 + $0x678] sm:$0xff]
    %v318 = vld [vmem:[#allocation5 + $0x680] sm:$0xff]
    %v319 = vld [vmem:[#allocation5 + $0x688] sm:$0xff]
    %v320 = vld [vmem:[#allocation5 + $0x690] sm:$0xff]
    %v321 = vld [vmem:[#allocation5 + $0x698] sm:$0xff]
    %v322 = vld [vmem:[#allocation5 + $0x6a0] sm:$0xff]
    %v323 = vld [vmem:[#allocation5 + $0x6a8] sm:$0xff]
    %v324 = vld [vmem:[#allocation5 + $0x6b0] sm:$0xff]
    %v325 = vld [vmem:[#allocation5 + $0x6b8] sm:$0xff]
    %v326 = vld [vmem:[#allocation5 + $0x6c0] sm:$0xff]
    %v327 = vld [vmem:[#allocation5 + $0x6c8] sm:$0xff]
    %v328 = vld [vmem:[#allocation5 + $0x6d0] sm:$0xff]
    %v329 = vld [vmem:[#allocation5 + $0x6d8] sm:$0xff]
    %v330 = vld [vmem:[#allocation5 + $0x6e0] sm:$0xff]
    %v331 = vld [vmem:[#allocation5 + $0x6e8] sm:$0xff]
    %v332 = vld [vmem:[#allocation5 + $0x6f0] sm:$0xff]
    %v333 = vld [vmem:[#allocation5 + $0x6f8] sm:$0xff]
    %v334 = vld [vmem:[#allocation5 + $0x700] sm:$0xff]
    %v335 = vld [vmem:[#allocation5 + $0x708] sm:$0xff]
    %v336 = vld [vmem:[#allocation5 + $0x710] sm:$0xff]
    %v337 = vld [vmem:[#allocation5 + $0x718] sm:$0xff]
    %v338 = vld [vmem:[#allocation5 + $0x720] sm:$0xff]
    %v339 = vld [vmem:[#allocation5 + $0x728] sm:$0xff]
    %v340 = vld [vmem:[#allocation5 + $0x730] sm:$0xff]
    %v341 = vld [vmem:[#allocation5 + $0x738] sm:$0xff]
    %v342 = vld [vmem:[#allocation5 + $0x740] sm:$0xff]
    %v343 = vld [vmem:[#allocation5 + $0x748] sm:$0xff]
    %v344 = vld [vmem:[#allocation5 + $0x750] sm:$0xff]
    %v345 = vld [vmem:[#allocation5 + $0x758] sm:$0xff]
    %v346 = vld [vmem:[#allocation5 + $0x760] sm:$0xff]
    %v347 = vld [vmem:[#allocation5 + $0x768] sm:$0xff]
    %v348 = vld [vmem:[#allocation5 + $0x770] sm:$0xff]
    %v349 = vld [vmem:[#allocation5 + $0x778] sm:$0xff]
    %v350 = vld [vmem:[#allocation5 + $0x780] sm:$0xff]
    %v351 = vld [vmem:[#allocation5 + $0x788] sm:$0xff]
    %v352 = vld [vmem:[#allocation5 + $0x790] sm:$0xff]
    %v353 = vld [vmem:[#allocation5 + $0x798] sm:$0xff]
    %v354 = vld [vmem:[#allocation5 + $0x7a0] sm:$0xff]
    %v355 = vld [vmem:[#allocation5 + $0x7a8] sm:$0xff]
    %v356 = vld [vmem:[#allocation5 + $0x7b0] sm:$0xff]
    %v357 = vld [vmem:[#allocation5 + $0x7b8] sm:$0xff]
    %v358 = vld [vmem:[#allocation5 + $0x7c0] sm:$0xff]
    %v359 = vld [vmem:[#allocation5 + $0x7c8] sm:$0xff]
    %v360 = vld [vmem:[#allocation5 + $0x7d0] sm:$0xff]
    %v361 = vld [vmem:[#allocation5 + $0x7d8] sm:$0xff]
    %v362 = vld [vmem:[#allocation5 + $0x7e0] sm:$0xff]
    %v363 = vld [vmem:[#allocation5 + $0x7e8] sm:$0xff]
    %v364 = vld [vmem:[#allocation5 + $0x7f0] sm:$0xff]
    %v365 = vld [vmem:[#allocation5 + $0x7f8] sm:$0xff]
    %v367 = vlaneseq
    %v368 = vshrl.u32 %v367, 7
    %v369 = vsub.s32 0, %v368
    %v370 = vrot.slane %v107, %v369
    %v371 = vlaneseq
    %v372 = vshrl.u32 %v371, 7
    %v373 = vsub.s32 1, %v372
    %v374 = vrot.slane %v107, %v373
    %v379 = vcombine.high %v57, %v57
    %v381 = vunpack.c.l.s4 1983009808
    %v382 = vunpack.c.0.s8 %v381
    %v383 = vlaneseq
    %v384 = vshrl.u32 %v383, 7
    %v385 = vsub.s32 %v382, %v384
    %v386 = vrot.slane %v57, %v385
    %v388 = vunpack.c.l.s4 1983009808
    %v389 = vunpack.c.0.s8 %v388
    %v390 = vlaneseq
    %v391 = vshrl.u32 %v390, 7
    %v392 = vsub.s32 %v389, %v391
    %v393 = vrot.slane %v379, %v392
    %v394 = vcombine.high %v386, %v386
    %v395 = vcombine.high %v393, %v393
    %v396 = vcombine.high %v58, %v58
    %v398 = vunpack.c.l.s4 1983009808
    %v399 = vunpack.c.0.s8 %v398
    %v400 = vlaneseq
    %v401 = vshrl.u32 %v400, 7
    %v402 = vsub.s32 %v399, %v401
    %v403 = vrot.slane %v58, %v402
    %v405 = vunpack.c.l.s4 1983009808
    %v406 = vunpack.c.0.s8 %v405
    %v407 = vlaneseq
    %v408 = vshrl.u32 %v407, 7
    %v409 = vsub.s32 %v406, %v408
    %v410 = vrot.slane %v396, %v409
    %v411 = vcombine.high %v403, %v403
    %v412 = vcombine.high %v410, %v410
    %421 = vmatprep.subr.mxu0 %v141
    %422 = vmatpush1.msra.mxu0 %v140
    %423 = vmatprep.subr.mxu0 %v139
    %424 = vmatpush1.msra.mxu0 %v138
    %425 = vmatprep.subr.mxu0 %v137
    %426 = vmatpush1.msra.mxu0 %v136
    %427 = vmatprep.subr.mxu0 %v135
    %428 = vmatpush1.msra.mxu0 %v134
    %429 = vmatprep.subr.mxu0 %v133
    %430 = vmatpush1.msra.mxu0 %v132
    %431 = vmatprep.subr.mxu0 %v131
    %432 = vmatpush1.msra.mxu0 %v130
    %433 = vmatprep.subr.mxu0 %v129
    %434 = vmatpush1.msra.mxu0 %v128
    %435 = vmatprep.subr.mxu0 %v127
    %436 = vmatpush1.msra.mxu0 %v126
    %437 = vmatprep.subr.mxu0 %v125
    %438 = vmatpush1.msra.mxu0 %v124
    %439 = vmatprep.subr.mxu0 %v123
    %440 = vmatpush1.msra.mxu0 %v122
    %441 = vmatprep.subr.mxu0 %v121
    %442 = vmatpush1.msra.mxu0 %v120
    %443 = vmatprep.subr.mxu0 %v119
    %444 = vmatpush1.msra.mxu0 %v118
    %445 = vmatprep.subr.mxu0 %v117
    %446 = vmatpush1.msra.mxu0 %v116
    %447 = vmatprep.subr.mxu0 %v115
    %448 = vmatpush1.msra.mxu0 %v114
    %449 = vmatprep.subr.mxu0 %v113
    %450 = vmatpush1.msra.mxu0 %v112
    %451 = vmatprep.subr.mxu0 %v111
    %452 = vmatpush1.msra.mxu0 %v110
    %453 = vmatprep.subr.mxu0 %v173
    %454 = vmatpush2.msra.mxu0 %v172
    %455 = vmatprep.subr.mxu0 %v171
    %456 = vmatpush2.msra.mxu0 %v170
    %457 = vmatprep.subr.mxu0 %v169
    %458 = vmatpush2.msra.mxu0 %v168
    %459 = vmatprep.subr.mxu0 %v167
    %460 = vmatpush2.msra.mxu0 %v166
    %461 = vmatprep.subr.mxu0 %v165
    %462 = vmatpush2.msra.mxu0 %v164
    %463 = vmatprep.subr.mxu0 %v163
    %464 = vmatpush2.msra.mxu0 %v162
    %465 = vmatprep.subr.mxu0 %v161
    %466 = vmatpush2.msra.mxu0 %v160
    %467 = vmatprep.subr.mxu0 %v159
    %468 = vmatpush2.msra.mxu0 %v158
    %469 = vmatprep.subr.mxu0 %v157
    %470 = vmatpush2.msra.mxu0 %v156
    %471 = vmatprep.subr.mxu0 %v155
    %472 = vmatpush2.msra.mxu0 %v154
    %473 = vmatprep.subr.mxu0 %v153
    %474 = vmatpush2.msra.mxu0 %v152
    %475 = vmatprep.subr.mxu0 %v151
    %476 = vmatpush2.msra.mxu0 %v150
    %477 = vmatprep.subr.mxu0 %v149
    %478 = vmatpush2.msra.mxu0 %v148
    %479 = vmatprep.subr.mxu0 %v147
    %480 = vmatpush2.msra.mxu0 %v146
    %481 = vmatprep.subr.mxu0 %v145
    %482 = vmatpush2.msra.mxu0 %v144
    %483 = vmatprep.subr.mxu0 %v143
    %484 = vmatpush2.msra.mxu0 %v142
    %485 = vmatprep.mubr.f32.mxu0 %v394
    %486 = vmatmul.mubr.f32.gmra.mxu0 %v386
    %v487 = vpop.f32.mrf.mxu0
    %v488 = vadd.f32 %v370, %v487
    %v489 = vpop.f32.mrf.mxu0
    %v490 = vadd.f32 %v374, %v489
    %491 = vdwg.mxu0
    %492 = vmatprep.subr.mxu0 %v205
    %493 = vmatpush1.msra.mxu0 %v204
    %494 = vmatprep.subr.mxu0 %v203
    %495 = vmatpush1.msra.mxu0 %v202
    %496 = vmatprep.subr.mxu0 %v201
    %497 = vmatpush1.msra.mxu0 %v200
    %498 = vmatprep.subr.mxu0 %v199
    %499 = vmatpush1.msra.mxu0 %v198
    %500 = vmatprep.subr.mxu0 %v197
    %501 = vmatpush1.msra.mxu0 %v196
    %502 = vmatprep.subr.mxu0 %v195
    %503 = vmatpush1.msra.mxu0 %v194
    %504 = vmatprep.subr.mxu0 %v193
    %505 = vmatpush1.msra.mxu0 %v192
    %506 = vmatprep.subr.mxu0 %v191
    %507 = vmatpush1.msra.mxu0 %v190
    %508 = vmatprep.subr.mxu0 %v189
    %509 = vmatpush1.msra.mxu0 %v188
    %510 = vmatprep.subr.mxu0 %v187
    %511 = vmatpush1.msra.mxu0 %v186
    %512 = vmatprep.subr.mxu0 %v185
    %513 = vmatpush1.msra.mxu0 %v184
    %514 = vmatprep.subr.mxu0 %v183
    %515 = vmatpush1.msra.mxu0 %v182
    %516 = vmatprep.subr.mxu0 %v181
    %517 = vmatpush1.msra.mxu0 %v180
    %518 = vmatprep.subr.mxu0 %v179
    %519 = vmatpush1.msra.mxu0 %v178
    %520 = vmatprep.subr.mxu0 %v177
    %521 = vmatpush1.msra.mxu0 %v176
    %522 = vmatprep.subr.mxu0 %v175
    %523 = vmatpush1.msra.mxu0 %v174
    %524 = vmatprep.subr.mxu0 %v237
    %525 = vmatpush2.msra.mxu0 %v236
    %526 = vmatprep.subr.mxu0 %v235
    %527 = vmatpush2.msra.mxu0 %v234
    %528 = vmatprep.subr.mxu0 %v233
    %529 = vmatpush2.msra.mxu0 %v232
    %530 = vmatprep.subr.mxu0 %v231
    %531 = vmatpush2.msra.mxu0 %v230
    %532 = vmatprep.subr.mxu0 %v229
    %533 = vmatpush2.msra.mxu0 %v228
    %534 = vmatprep.subr.mxu0 %v227
    %535 = vmatpush2.msra.mxu0 %v226
    %536 = vmatprep.subr.mxu0 %v225
    %537 = vmatpush2.msra.mxu0 %v224
    %538 = vmatprep.subr.mxu0 %v223
    %539 = vmatpush2.msra.mxu0 %v222
    %540 = vmatprep.subr.mxu0 %v221
    %541 = vmatpush2.msra.mxu0 %v220
    %542 = vmatprep.subr.mxu0 %v219
    %543 = vmatpush2.msra.mxu0 %v218
    %544 = vmatprep.subr.mxu0 %v217
    %545 = vmatpush2.msra.mxu0 %v216
    %546 = vmatprep.subr.mxu0 %v215
    %547 = vmatpush2.msra.mxu0 %v214
    %548 = vmatprep.subr.mxu0 %v213
    %549 = vmatpush2.msra.mxu0 %v212
    %550 = vmatprep.subr.mxu0 %v211
    %551 = vmatpush2.msra.mxu0 %v210
    %552 = vmatprep.subr.mxu0 %v209
    %553 = vmatpush2.msra.mxu0 %v208
    %554 = vmatprep.subr.mxu0 %v207
    %555 = vmatpush2.msra.mxu0 %v206
    %556 = vmatprep.mubr.f32.mxu0 %v395
    %557 = vmatmul.mubr.f32.gmra.mxu0 %v393
    %v558 = vpop.f32.mrf.mxu0
    %v559 = vadd.f32 %v488, %v558
    %v560 = vpop.f32.mrf.mxu0
    %v561 = vadd.f32 %v490, %v560
    %562 = vdwg.mxu0
    %563 = vmatprep.subr.mxu0 %v269
    %564 = vmatpush1.msra.mxu0 %v268
    %565 = vmatprep.subr.mxu0 %v267
    %566 = vmatpush1.msra.mxu0 %v266
    %567 = vmatprep.subr.mxu0 %v265
    %568 = vmatpush1.msra.mxu0 %v264
    %569 = vmatprep.subr.mxu0 %v263
    %570 = vmatpush1.msra.mxu0 %v262
    %571 = vmatprep.subr.mxu0 %v261
    %572 = vmatpush1.msra.mxu0 %v260
    %573 = vmatprep.subr.mxu0 %v259
    %574 = vmatpush1.msra.mxu0 %v258
    %575 = vmatprep.subr.mxu0 %v257
    %576 = vmatpush1.msra.mxu0 %v256
    %577 = vmatprep.subr.mxu0 %v255
    %578 = vmatpush1.msra.mxu0 %v254
    %579 = vmatprep.subr.mxu0 %v253
    %580 = vmatpush1.msra.mxu0 %v252
    %581 = vmatprep.subr.mxu0 %v251
    %582 = vmatpush1.msra.mxu0 %v250
    %583 = vmatprep.subr.mxu0 %v249
    %584 = vmatpush1.msra.mxu0 %v248
    %585 = vmatprep.subr.mxu0 %v247
    %586 = vmatpush1.msra.mxu0 %v246
    %587 = vmatprep.subr.mxu0 %v245
    %588 = vmatpush1.msra.mxu0 %v244
    %589 = vmatprep.subr.mxu0 %v243
    %590 = vmatpush1.msra.mxu0 %v242
    %591 = vmatprep.subr.mxu0 %v241
    %592 = vmatpush1.msra.mxu0 %v240
    %593 = vmatprep.subr.mxu0 %v239
    %594 = vmatpush1.msra.mxu0 %v238
    %595 = vmatprep.subr.mxu0 %v301
    %596 = vmatpush2.msra.mxu0 %v300
    %597 = vmatprep.subr.mxu0 %v299
    %598 = vmatpush2.msra.mxu0 %v298
    %599 = vmatprep.subr.mxu0 %v297
    %600 = vmatpush2.msra.mxu0 %v296
    %601 = vmatprep.subr.mxu0 %v295
    %602 = vmatpush2.msra.mxu0 %v294
    %603 = vmatprep.subr.mxu0 %v293
    %604 = vmatpush2.msra.mxu0 %v292
    %605 = vmatprep.subr.mxu0 %v291
    %606 = vmatpush2.msra.mxu0 %v290
    %607 = vmatprep.subr.mxu0 %v289
    %608 = vmatpush2.msra.mxu0 %v288
    %609 = vmatprep.subr.mxu0 %v287
    %610 = vmatpush2.msra.mxu0 %v286
    %611 = vmatprep.subr.mxu0 %v285
    %612 = vmatpush2.msra.mxu0 %v284
    %613 = vmatprep.subr.mxu0 %v283
    %614 = vmatpush2.msra.mxu0 %v282
    %615 = vmatprep.subr.mxu0 %v281
    %616 = vmatpush2.msra.mxu0 %v280
    %617 = vmatprep.subr.mxu0 %v279
    %618 = vmatpush2.msra.mxu0 %v278
    %619 = vmatprep.subr.mxu0 %v277
    %620 = vmatpush2.msra.mxu0 %v276
    %621 = vmatprep.subr.mxu0 %v275
    %622 = vmatpush2.msra.mxu0 %v274
    %623 = vmatprep.subr.mxu0 %v273
    %624 = vmatpush2.msra.mxu0 %v272
    %625 = vmatprep.subr.mxu0 %v271
    %626 = vmatpush2.msra.mxu0 %v270
    %627 = vmatprep.mubr.f32.mxu0 %v411
    %628 = vmatmul.mubr.f32.gmra.mxu0 %v403
    %v629 = vpop.f32.mrf.mxu0
    %v630 = vadd.f32 %v559, %v629
    %v631 = vpop.f32.mrf.mxu0
    %v632 = vadd.f32 %v561, %v631
    %633 = vdwg.mxu0
    %634 = vmatprep.subr.mxu0 %v333
    %635 = vmatpush1.msra.mxu0 %v332
    %636 = vmatprep.subr.mxu0 %v331
    %637 = vmatpush1.msra.mxu0 %v330
    %638 = vmatprep.subr.mxu0 %v329
    %639 = vmatpush1.msra.mxu0 %v328
    %640 = vmatprep.subr.mxu0 %v327
    %641 = vmatpush1.msra.mxu0 %v326
    %642 = vmatprep.subr.mxu0 %v325
    %643 = vmatpush1.msra.mxu0 %v324
    %644 = vmatprep.subr.mxu0 %v323
    %645 = vmatpush1.msra.mxu0 %v322
    %646 = vmatprep.subr.mxu0 %v321
    %647 = vmatpush1.msra.mxu0 %v320
    %648 = vmatprep.subr.mxu0 %v319
    %649 = vmatpush1.msra.mxu0 %v318
    %650 = vmatprep.subr.mxu0 %v317
    %651 = vmatpush1.msra.mxu0 %v316
    %652 = vmatprep.subr.mxu0 %v315
    %653 = vmatpush1.msra.mxu0 %v314
    %654 = vmatprep.subr.mxu0 %v313
    %655 = vmatpush1.msra.mxu0 %v312
    %656 = vmatprep.subr.mxu0 %v311
    %657 = vmatpush1.msra.mxu0 %v310
    %658 = vmatprep.subr.mxu0 %v309
    %659 = vmatpush1.msra.mxu0 %v308
    %660 = vmatprep.subr.mxu0 %v307
    %661 = vmatpush1.msra.mxu0 %v306
    %662 = vmatprep.subr.mxu0 %v305
    %663 = vmatpush1.msra.mxu0 %v304
    %664 = vmatprep.subr.mxu0 %v303
    %665 = vmatpush1.msra.mxu0 %v302
    %666 = vmatprep.subr.mxu0 %v365
    %667 = vmatpush2.msra.mxu0 %v364
    %668 = vmatprep.subr.mxu0 %v363
    %669 = vmatpush2.msra.mxu0 %v362
    %670 = vmatprep.subr.mxu0 %v361
    %671 = vmatpush2.msra.mxu0 %v360
    %672 = vmatprep.subr.mxu0 %v359
    %673 = vmatpush2.msra.mxu0 %v358
    %674 = vmatprep.subr.mxu0 %v357
    %675 = vmatpush2.msra.mxu0 %v356
    %676 = vmatprep.subr.mxu0 %v355
    %677 = vmatpush2.msra.mxu0 %v354
    %678 = vmatprep.subr.mxu0 %v353
    %679 = vmatpush2.msra.mxu0 %v352
    %680 = vmatprep.subr.mxu0 %v351
    %681 = vmatpush2.msra.mxu0 %v350
    %682 = vmatprep.subr.mxu0 %v349
    %683 = vmatpush2.msra.mxu0 %v348
    %684 = vmatprep.subr.mxu0 %v347
    %685 = vmatpush2.msra.mxu0 %v346
    %686 = vmatprep.subr.mxu0 %v345
    %687 = vmatpush2.msra.mxu0 %v344
    %688 = vmatprep.subr.mxu0 %v343
    %689 = vmatpush2.msra.mxu0 %v342
    %690 = vmatprep.subr.mxu0 %v341
    %691 = vmatpush2.msra.mxu0 %v340
    %692 = vmatprep.subr.mxu0 %v339
    %693 = vmatpush2.msra.mxu0 %v338
    %694 = vmatprep.subr.mxu0 %v337
    %695 = vmatpush2.msra.mxu0 %v336
    %696 = vmatprep.subr.mxu0 %v335
    %697 = vmatpush2.msra.mxu0 %v334
    %698 = vmatprep.mubr.f32.mxu0 %v412
    %699 = vmatmul.mubr.f32.gmra.mxu0 %v410
    %v700 = vpop.f32.mrf.mxu0
    %v701 = vadd.f32 %v630, %v700
    %v702 = vpop.f32.mrf.mxu0
    %v703 = vadd.f32 %v632, %v702
    %704 = vdwg.mxu0
    %v705 = vmax.f32 %v701, 0.0
    %v706 = vmax.f32 %v703, 0.0
    %v708 = vlaneseq
    %v709 = vshrl.u32 %v708, 7
    %v710 = vsub.s32 0, %v709
    %v711 = vrot.slane %v108, %v710
    %713 = vmatprep.subr.mxu0 0.0
    %714 = vmatpush1.msra.mxu0 %v74
    %715 = vmatprep.subr.mxu0 0.0
    %716 = vmatpush1.msra.mxu0 %v73
    %717 = vmatprep.subr.mxu0 0.0
    %718 = vmatpush1.msra.mxu0 %v72
    %719 = vmatprep.subr.mxu0 0.0
    %720 = vmatpush1.msra.mxu0 %v71
    %721 = vmatprep.subr.mxu0 0.0
    %722 = vmatpush1.msra.mxu0 %v70
    %723 = vmatprep.subr.mxu0 0.0
    %724 = vmatpush1.msra.mxu0 %v69
    %725 = vmatprep.subr.mxu0 0.0
    %726 = vmatpush1.msra.mxu0 %v68
    %727 = vmatprep.subr.mxu0 0.0
    %728 = vmatpush1.msra.mxu0 %v67
    %729 = vmatprep.subr.mxu0 0.0
    %730 = vmatpush1.msra.mxu0 %v66
    %731 = vmatprep.subr.mxu0 0.0
    %732 = vmatpush1.msra.mxu0 %v65
    %733 = vmatprep.subr.mxu0 0.0
    %734 = vmatpush1.msra.mxu0 %v64
    %735 = vmatprep.subr.mxu0 0.0
    %736 = vmatpush1.msra.mxu0 %v63
    %737 = vmatprep.subr.mxu0 0.0
    %738 = vmatpush1.msra.mxu0 %v62
    %739 = vmatprep.subr.mxu0 0.0
    %740 = vmatpush1.msra.mxu0 %v61
    %741 = vmatprep.subr.mxu0 0.0
    %742 = vmatpush1.msra.mxu0 %v60
    %743 = vmatprep.subr.mxu0 0.0
    %744 = vmatpush1.msra.mxu0 %v59
    %745 = vmatprep.subr.mxu0 0.0
    %746 = vmatpush2.msra.mxu0 %v90
    %747 = vmatprep.subr.mxu0 0.0
    %748 = vmatpush2.msra.mxu0 %v89
    %749 = vmatprep.subr.mxu0 0.0
    %750 = vmatpush2.msra.mxu0 %v88
    %751 = vmatprep.subr.mxu0 0.0
    %752 = vmatpush2.msra.mxu0 %v87
    %753 = vmatprep.subr.mxu0 0.0
    %754 = vmatpush2.msra.mxu0 %v86
    %755 = vmatprep.subr.mxu0 0.0
    %756 = vmatpush2.msra.mxu0 %v85
    %757 = vmatprep.subr.mxu0 0.0
    %758 = vmatpush2.msra.mxu0 %v84
    %759 = vmatprep.subr.mxu0 0.0
    %760 = vmatpush2.msra.mxu0 %v83
    %761 = vmatprep.subr.mxu0 0.0
    %762 = vmatpush2.msra.mxu0 %v82
    %763 = vmatprep.subr.mxu0 0.0
    %764 = vmatpush2.msra.mxu0 %v81
    %765 = vmatprep.subr.mxu0 0.0
    %766 = vmatpush2.msra.mxu0 %v80
    %767 = vmatprep.subr.mxu0 0.0
    %768 = vmatpush2.msra.mxu0 %v79
    %769 = vmatprep.subr.mxu0 0.0
    %770 = vmatpush2.msra.mxu0 %v78
    %771 = vmatprep.subr.mxu0 0.0
    %772 = vmatpush2.msra.mxu0 %v77
    %773 = vmatprep.subr.mxu0 0.0
    %774 = vmatpush2.msra.mxu0 %v76
    %775 = vmatprep.subr.mxu0 0.0
    %776 = vmatpush2.msra.mxu0 %v75
    %777 = vmatprep.mubr.f32.mxu0 %v706
    %778 = vmatmul.mubr.f32.gmra.mxu0 %v705
    %v779 = vpop.f32.mrf.mxu0
    %v780 = vadd.f32 %v711, %v779
    %v781 = vpop.f32.mrf.mxu0
    %782 = vdwg.mxu0
    %v783 = vmax.f32 %v780, 0.0
    %v785 = vlaneseq
    %v786 = vshrl.u32 %v785, 7
    %v787 = vsub.s32 0, %v786
    %v788 = vrot.slane %v109, %v787
    %790 = vmatprep.subr.mxu0 0.0
    %791 = vmatpush1.msra.mxu0 %v106
    %792 = vmatprep.subr.mxu0 0.0
    %793 = vmatpush1.msra.mxu0 %v105
    %794 = vmatprep.subr.mxu0 0.0
    %795 = vmatpush1.msra.mxu0 %v104
    %796 = vmatprep.subr.mxu0 0.0
    %797 = vmatpush1.msra.mxu0 %v103
    %798 = vmatprep.subr.mxu0 0.0
    %799 = vmatpush1.msra.mxu0 %v102
    %800 = vmatprep.subr.mxu0 0.0
    %801 = vmatpush1.msra.mxu0 %v101
    %802 = vmatprep.subr.mxu0 0.0
    %803 = vmatpush1.msra.mxu0 %v100
    %804 = vmatprep.subr.mxu0 0.0
    %805 = vmatpush1.msra.mxu0 %v99
    %806 = vmatprep.subr.mxu0 0.0
    %807 = vmatpush1.msra.mxu0 %v98
    %808 = vmatprep.subr.mxu0 0.0
    %809 = vmatpush1.msra.mxu0 %v97
    %810 = vmatprep.subr.mxu0 0.0
    %811 = vmatpush1.msra.mxu0 %v96
    %812 = vmatprep.subr.mxu0 0.0
    %813 = vmatpush1.msra.mxu0 %v95
    %814 = vmatprep.subr.mxu0 0.0
    %815 = vmatpush1.msra.mxu0 %v94
    %816 = vmatprep.subr.mxu0 0.0
    %817 = vmatpush1.msra.mxu0 %v93
    %818 = vmatprep.subr.mxu0 0.0
    %819 = vmatpush1.msra.mxu0 %v92
    %820 = vmatprep.subr.mxu0 0.0
    %821 = vmatpush1.msra.mxu0 %v91
    %822 = vmatprep.subr.mxu0 0.0
    %823 = vmatpush2.msra.mxu0 0.0
    %824 = vmatprep.subr.mxu0 0.0
    %825 = vmatpush2.msra.mxu0 0.0
    %826 = vmatprep.subr.mxu0 0.0
    %827 = vmatpush2.msra.mxu0 0.0
    %828 = vmatprep.subr.mxu0 0.0
    %829 = vmatpush2.msra.mxu0 0.0
    %830 = vmatprep.subr.mxu0 0.0
    %831 = vmatpush2.msra.mxu0 0.0
    %832 = vmatprep.subr.mxu0 0.0
    %833 = vmatpush2.msra.mxu0 0.0
    %834 = vmatprep.subr.mxu0 0.0
    %835 = vmatpush2.msra.mxu0 0.0
    %836 = vmatprep.subr.mxu0 0.0
    %837 = vmatpush2.msra.mxu0 0.0
    %838 = vmatprep.subr.mxu0 0.0
    %839 = vmatpush2.msra.mxu0 0.0
    %840 = vmatprep.subr.mxu0 0.0
    %841 = vmatpush2.msra.mxu0 0.0
    %842 = vmatprep.subr.mxu0 0.0
    %843 = vmatpush2.msra.mxu0 0.0
    %844 = vmatprep.subr.mxu0 0.0
    %845 = vmatpush2.msra.mxu0 0.0
    %846 = vmatprep.subr.mxu0 0.0
    %847 = vmatpush2.msra.mxu0 0.0
    %848 = vmatprep.subr.mxu0 0.0
    %849 = vmatpush2.msra.mxu0 0.0
    %850 = vmatprep.subr.mxu0 0.0
    %851 = vmatpush2.msra.mxu0 0.0
    %852 = vmatprep.subr.mxu0 0.0
    %853 = vmatpush2.msra.mxu0 0.0
    %854 = vmatprep.mubr.f32.mxu0 0.0
    %855 = vmatmul.mubr.f32.gmra.mxu0 %v783
    %v856 = vpop.f32.mrf.mxu0
    %v857 = vadd.f32 %v788, %v856
    %v858 = vpop.f32.mrf.mxu0
    %859 = vdwg.mxu0
    %860 = vst [vmem:[#allocation8] sm:$0x3] %v857
    // Predicated region
    $region30: #{tpu_custom_call.1} parent=1 // pred_check
      _
    $region31: #{tpu_custom_call.1} parent=1 // pred_check_branch
      %862 = sbr.rel (0) target = $region33
    $region32: #{tpu_custom_call.1} parent=1 // pred_region
      %s864 = ssub.s32 32, 32
      %865 = vsyncadd [#allocation4], %s864
      %s867 = sshll.u32 [#allocation8], 4
      %s868 = int_to_ptr.vmem [resolvable:$true] %s867
      %870 = dma.vmem_to_hbm [thread:$0]  %s868, 32, %s4, [#allocation4]
    $region33: #{tpu_custom_call.1} parent=1 // pred_fallthru
      _
    // Predicated region
    $region34: #{tpu_custom_call.1} parent=1 // pred_check
      _
    $region35: #{tpu_custom_call.1} parent=1 // pred_check_branch
      %872 = sbr.rel (0) target = $region37
    $region36: #{tpu_custom_call.1} parent=1 // pred_region
      %873 = dma.done [#allocation4], 32
    $region37: #{tpu_custom_call.1} parent=1 // pred_fallthru
      _
    %874 = vsyncpa [#allocation3], 1
    %875 = vsyncpa [#allocation6], 1
    %876 = vsyncpa [#allocation4], 1

</llo_original>
